<compile_context>
chip_gen: v5e
topology: v5e:2x2
jax: 0.10.0
libtpu: 0.0.40
codegen_flags: <defaults>
</compile_context>

<pallas_src>
import functools

import jax
import jax.numpy as jnp
import numpy as np
from jax import lax
from jax.experimental import pallas as pl
from jax.experimental.pallas import tpu as pltpu


def _same_pad_amount(in_size, k, s, d=1):
    """TF-style SAME padding (matches conv2d_same_padding in the PyTorch code)."""
    eff = (k - 1) * d + 1
    out = (in_size + s - 1) // s
    pad = max(0, (out - 1) * s + eff - in_size)
    return pad // 2, pad - pad // 2, out


def _conv_bn_relu_kernel(x_ref, w_ref, off_ref, o_ref, *,
                         KH, OH, SH, WC, OWC, tap_ranges):
    # x_ref:   (H, W*Cin)            one batch element, NHWC rows flattened
    # w_ref:   (KH, W*Cin, OW*Cout)  lowered conv weights (BN scale folded in)
    # off_ref: (1, OW*Cout)          folded BN offset, tiled along OW
    # o_ref:   (OH, OW*Cout)         lane-dense output block
    xv = x_ref[...]

    acc = jnp.zeros((OH, OWC), jnp.float32)
    for kh in range(KH):                       # KH is tiny (3): static unroll
        oh_lo, oh_hi, row_start = tap_ranges[kh]
        n = oh_hi - oh_lo
        if n <= 0:
            continue
        if SH == 1:
            lhs = xv[row_start:row_start + n, :]
        else:
            # TODO(synk): strided value slice is untested here (module test uses
            # stride=1); validate lowering/perf before relying on stride>1.
            lhs = xv[row_start:row_start + (n - 1) * SH + 1:SH, :]
        # One MXU dot per kh tap; result is already (rows, OW*Cout) lane-dense.
        part = jnp.dot(lhs, w_ref[kh], preferred_element_type=jnp.float32)
        if n != OH:
            pieces = []
            if oh_lo > 0:
                pieces.append(jnp.zeros((oh_lo, OWC), jnp.float32))
            pieces.append(part)
            if oh_hi < OH:
                pieces.append(jnp.zeros((OH - oh_hi, OWC), jnp.float32))
            part = jnp.concatenate(pieces, axis=0)
        acc = acc + part

    y = jnp.maximum(acc + off_ref[...], 0.0)   # folded BN + ReLU; dropout(eval)=id
    o_ref[...] = y.astype(o_ref.dtype)         # single dense (OH, OW*Cout) store


def conv_block_forward_nhwc(x_nhwc, weight_oihw, bias, gamma, beta,
                            run_mean, run_var, *, stride=(1, 1), eps=1e-5):
    """ConvBlock forward in eval mode on NHWC activations (recommended hot path)."""
    N, H, W, Cin = x_nhwc.shape
    Cout, _, KH, KW = weight_oihw.shape
    SH, SW = stride

    pt, pb, OH = _same_pad_amount(H, KH, SH)
    pw_l, pw_r, OW = _same_pad_amount(W, KW, SW)
    WC, OWC = W * Cin, OW * Cout

    # --- constant weight transforms (once per call; precompute in a real net) ---
    scale = gamma / jnp.sqrt(run_var + eps)                       # (Cout,)
    offset = (bias - run_mean) * scale + beta                     # (Cout,)
    w_s = jnp.transpose(weight_oihw, (2, 3, 1, 0)) * scale        # (KH,KW,Cin,Cout)

    # Lowered-along-W ("Toeplitz") weight:
    #   W_low[kh, iw*Cin+ci, ow*Cout+co] = sum_kw w_s[kh,kw,ci,co] *
    #                                      [iw == ow*SW + kw - pw_l, 0 <= iw < W]
    # It absorbs the kw/Cin reductions, the SAME column padding and the ow map.
    sel = np.zeros((KW, W, OW), np.float32)
    for kw in range(KW):
        for ow in range(OW):
            iw = ow * SW + kw - pw_l
            if 0 <= iw < W:
                sel[kw, iw, ow] = 1.0
    w_low = jnp.einsum('hkio,kwq->hwiqo', w_s.astype(jnp.float32),
                       jnp.asarray(sel))
    w_low = w_low.reshape(KH, WC, OWC).astype(x_nhwc.dtype)
    off_row = jnp.tile(offset, OW).reshape(1, OWC).astype(jnp.float32)

    # Static per-tap output-row ranges (SAME row padding without any pad buffer).
    tap_ranges = []
    for kh in range(KH):
        oh_lo = max(0, -((kh - pt) // SH))                 # ceil((pt-kh)/SH)
        oh_hi = min(OH, (H - 1 + pt - kh) // SH + 1)
        tap_ranges.append((oh_lo, oh_hi, oh_lo * SH + kh - pt))
    tap_ranges = tuple(tap_ranges)

    x_flat = x_nhwc.reshape(N, H, WC)   # trailing-dim merge: no data movement

    kernel = functools.partial(_conv_bn_relu_kernel, KH=KH, OH=OH, SH=SH,
                               WC=WC, OWC=OWC, tap_ranges=tap_ranges)

    out = pl.pallas_call(
        kernel,
        out_shape=jax.ShapeDtypeStruct((N, OH, OWC), x_nhwc.dtype),
        grid_spec=pltpu.PrefetchScalarGridSpec(
            num_scalar_prefetch=0,
            grid=(N,),
            in_specs=[
                pl.BlockSpec((None, H, WC), lambda n: (n, 0, 0)),
                pl.BlockSpec((KH, WC, OWC), lambda n: (0, 0, 0)),
                pl.BlockSpec((1, OWC), lambda n: (0, 0)),
            ],
            out_specs=pl.BlockSpec((None, OH, OWC), lambda n: (n, 0, 0)),
        ),
        compiler_params=pltpu.CompilerParams(
            dimension_semantics=("parallel",)),
    )(x_flat, w_low, off_row)

    return out.reshape(N, OH, OW, Cout)


def conv_block_forward(x_nchw, weight_oihw, bias, gamma, beta, run_mean, run_var,
                       *, stride=(1, 1), eps=1e-5):
    """NCHW boundary wrapper matching the PyTorch module convention.

    The transposes are layout glue only; in a full network keep activations
    NHWC across blocks and call conv_block_forward_nhwc directly to avoid the
    two extra HBM passes per ConvBlock.
    """
    x_nhwc = jnp.transpose(x_nchw, (0, 2, 3, 1))
    y = conv_block_forward_nhwc(x_nhwc, weight_oihw, bias, gamma, beta,
                                run_mean, run_var, stride=stride, eps=eps)
    return jnp.transpose(y, (0, 3, 1, 2))


def _reference_forward(x_nchw, weight_oihw, bias, gamma, beta, run_mean, run_var,
                       *, stride=(1, 1), eps=1e-5):
    """Pure-JAX reference (eval-mode ConvBlock) for the correctness check."""
    N, Cin, H, W = x_nchw.shape
    Cout, _, KH, KW = weight_oihw.shape
    SH, SW = stride
    pt, pb, _ = _same_pad_amount(H, KH, SH)
    pw_l, pw_r, _ = _same_pad_amount(W, KW, SW)
    y = lax.conv_general_dilated(
        x_nchw, weight_oihw, window_strides=(SH, SW),
        padding=((pt, pb), (pw_l, pw_r)),
        dimension_numbers=("NCHW", "OIHW", "NCHW"))
    y = y + bias.reshape(1, Cout, 1, 1)
    y = (y - run_mean.reshape(1, Cout, 1, 1)) / jnp.sqrt(
        run_var.reshape(1, Cout, 1, 1) + eps)
    y = y * gamma.reshape(1, Cout, 1, 1) + beta.reshape(1, Cout, 1, 1)
    return jnp.maximum(y, 0.0)


if __name__ == "__main__":
    # Module config: ConvBlock(in_channels=4, out_channels=8, kernel_size=3,
    #                          stride=1, dropout=0.5)  (dropout inactive in eval)
    N, Cin, H, W = 2, 4, 16, 16
    Cout, K = 8, 3
    stride = (1, 1)

    key = jax.random.PRNGKey(0)
    kx, kw, kb, kg, kbt, km, kv = jax.random.split(key, 7)

    x = jax.random.normal(kx, (N, Cin, H, W), dtype=jnp.float32)
    weight = jax.random.normal(kw, (Cout, Cin, K, K), dtype=jnp.float32) * 0.1
    bias = jax.random.normal(kb, (Cout,), dtype=jnp.float32) * 0.1
    gamma = 1.0 + 0.1 * jax.random.normal(kg, (Cout,), dtype=jnp.float32)
    beta = 0.1 * jax.random.normal(kbt, (Cout,), dtype=jnp.float32)
    run_mean = 0.1 * jax.random.normal(km, (Cout,), dtype=jnp.float32)
    run_var = jnp.abs(jax.random.normal(kv, (Cout,), dtype=jnp.float32)) + 0.5

    out = conv_block_forward(x, weight, bias, gamma, beta, run_mean, run_var,
                             stride=stride)
    out = jax.block_until_ready(out)

    ref = _reference_forward(x, weight, bias, gamma, beta, run_mean, run_var,
                             stride=stride)
    ref = jax.block_until_ready(ref)

    np.testing.assert_allclose(np.asarray(out), np.asarray(ref),
                               rtol=1e-4, atol=1e-4)
    print("KERNEL_OK")
</pallas_src>

<mosaic_0001>
module attributes {stable_mosaic.version = 11 : i64} {
  func.func @_conv_bn_relu_kernel(%arg0: i32, %arg1: memref<1x16x64xf32, #tpu.memory_space<vmem>>, %arg2: memref<3x64x128xf32, #tpu.memory_space<vmem>>, %arg3: memref<1x128xf32, #tpu.memory_space<vmem>>, %arg4: memref<1x16x128xf32, #tpu.memory_space<vmem>>) attributes {dimension_semantics = [#tpu.dimension_semantics<parallel>], iteration_bounds = array<i64: 2>, scalar_prefetch = 0 : i64, scratch_operands = 0 : i64, tpu.core_type = #tpu.core_type<tc>, window_params = [{transform_indices = @transform_0, window_bounds = array<i64: 1, 16, 64>}, {pipeline_mode = #tpu.pipeline_mode<synchronous>, transform_indices = @transform_1, window_bounds = array<i64: 3, 64, 128>}, {pipeline_mode = #tpu.pipeline_mode<synchronous>, transform_indices = @transform_2, window_bounds = array<i64: 1, 128>}, {transform_indices = @transform_3, window_bounds = array<i64: 1, 16, 128>}]} {
    %c0 = arith.constant 0 : index
    %c0_0 = arith.constant 0 : index
    %c0_1 = arith.constant 0 : index
    %0 = vector.load %arg1[%c0, %c0_0, %c0_1] : memref<1x16x64xf32, #tpu.memory_space<vmem>>, vector<1x16x64xf32>
    %1 = vector.shape_cast %0 : vector<1x16x64xf32> to vector<16x64xf32>
    %cst = arith.constant 0.000000e+00 : f32
    %2 = vector.broadcast %cst : f32 to vector<16x128xf32>
    %3 = vector.extract_strided_slice %1 {offsets = [0, 0], sizes = [15, 64], strides = [1, 1]} : vector<16x64xf32> to vector<15x64xf32>
    %c0_2 = arith.constant 0 : index
    %c0_3 = arith.constant 0 : index
    %c0_4 = arith.constant 0 : index
    %4 = vector.load %arg2[%c0_2, %c0_3, %c0_4] : memref<3x64x128xf32, #tpu.memory_space<vmem>>, vector<1x64x128xf32>
    %5 = vector.shape_cast %4 : vector<1x64x128xf32> to vector<64x128xf32>
    %cst_5 = arith.constant dense<0.000000e+00> : vector<15x128xf32>
    %6 = tpu.matmul %3, %5, %cst_5 {dimension_numbers = #tpu.dot_dimension_numbers<[1], [0], [0], [1], [0, 0, 1, 1], [], []>} : vector<15x64xf32>, vector<64x128xf32>, vector<15x128xf32> -> vector<15x128xf32>
    %cst_6 = arith.constant 0.000000e+00 : f32
    %7 = vector.broadcast %cst_6 : f32 to vector<1x128xf32>
    %8 = tpu.concatenate %7, %6 in 0 : vector<1x128xf32>, vector<15x128xf32> -> vector<16x128xf32>
    %9 = arith.addf %2, %8 : vector<16x128xf32>
    %c1 = arith.constant 1 : index
    %c0_7 = arith.constant 0 : index
    %c0_8 = arith.constant 0 : index
    %10 = vector.load %arg2[%c1, %c0_7, %c0_8] : memref<3x64x128xf32, #tpu.memory_space<vmem>>, vector<1x64x128xf32>
    %11 = vector.shape_cast %10 : vector<1x64x128xf32> to vector<64x128xf32>
    %cst_9 = arith.constant dense<0.000000e+00> : vector<16x128xf32>
    %12 = tpu.matmul %1, %11, %cst_9 {dimension_numbers = #tpu.dot_dimension_numbers<[1], [0], [0], [1], [0, 0, 1, 1], [], []>} : vector<16x64xf32>, vector<64x128xf32>, vector<16x128xf32> -> vector<16x128xf32>
    %13 = arith.addf %9, %12 : vector<16x128xf32>
    %14 = vector.extract_strided_slice %1 {offsets = [1, 0], sizes = [15, 64], strides = [1, 1]} : vector<16x64xf32> to vector<15x64xf32>
    %c2 = arith.constant 2 : index
    %c0_10 = arith.constant 0 : index
    %c0_11 = arith.constant 0 : index
    %15 = vector.load %arg2[%c2, %c0_10, %c0_11] : memref<3x64x128xf32, #tpu.memory_space<vmem>>, vector<1x64x128xf32>
    %16 = vector.shape_cast %15 : vector<1x64x128xf32> to vector<64x128xf32>
    %cst_12 = arith.constant dense<0.000000e+00> : vector<15x128xf32>
    %17 = tpu.matmul %14, %16, %cst_12 {dimension_numbers = #tpu.dot_dimension_numbers<[1], [0], [0], [1], [0, 0, 1, 1], [], []>} : vector<15x64xf32>, vector<64x128xf32>, vector<15x128xf32> -> vector<15x128xf32>
    %cst_13 = arith.constant 0.000000e+00 : f32
    %18 = vector.broadcast %cst_13 : f32 to vector<1x128xf32>
    %19 = tpu.concatenate %17, %18 in 0 : vector<15x128xf32>, vector<1x128xf32> -> vector<16x128xf32>
    %20 = arith.addf %13, %19 : vector<16x128xf32>
    %c0_14 = arith.constant 0 : index
    %c0_15 = arith.constant 0 : index
    %21 = vector.load %arg3[%c0_14, %c0_15] : memref<1x128xf32, #tpu.memory_space<vmem>>, vector<1x128xf32>
    %22 = vector.broadcast %21 : vector<1x128xf32> to vector<16x128xf32>
    %23 = arith.addf %20, %22 : vector<16x128xf32>
    %cst_16 = arith.constant 0.000000e+00 : f32
    %24 = vector.broadcast %cst_16 : f32 to vector<16x128xf32>
    %25 = arith.maximumf %23, %24 : vector<16x128xf32>
    %c0_17 = arith.constant 0 : index
    %c0_18 = arith.constant 0 : index
    %c0_19 = arith.constant 0 : index
    %26 = vector.load %arg4[%c0_17, %c0_18, %c0_19] : memref<1x16x128xf32, #tpu.memory_space<vmem>>, vector<1x16x128xf32>
    %27 = vector.shape_cast %26 : vector<1x16x128xf32> to vector<16x128xf32>
    %28 = vector.shape_cast %25 : vector<16x128xf32> to vector<1x16x128xf32>
    tpu.vector_store %arg4[%c0_17, %c0_18, %c0_19], %28 {strides = array<i32>} : memref<1x16x128xf32, #tpu.memory_space<vmem>>, vector<1x16x128xf32>,
    return
  }
  func.func @transform_0(%arg0: i32) -> (i32, i32, i32) {
    %c0_i32 = arith.constant 0 : i32
    %c0_i32_0 = arith.constant 0 : i32
    %c0_i32_1 = arith.constant 0 : i32
    return %arg0, %c0_i32, %c0_i32_0 : i32, i32, i32
  }
  func.func @transform_1(%arg0: i32) -> (i32, i32, i32) {
    %c0_i32 = arith.constant 0 : i32
    %c0_i32_0 = arith.constant 0 : i32
    %c0_i32_1 = arith.constant 0 : i32
    %c0_i32_2 = arith.constant 0 : i32
    return %c0_i32, %c0_i32_0, %c0_i32_1 : i32, i32, i32
  }
  func.func @transform_2(%arg0: i32) -> (i32, i32) {
    %c0_i32 = arith.constant 0 : i32
    %c0_i32_0 = arith.constant 0 : i32
    %c0_i32_1 = arith.constant 0 : i32
    return %c0_i32, %c0_i32_0 : i32, i32
  }
  func.func @transform_3(%arg0: i32) -> (i32, i32, i32) {
    %c0_i32 = arith.constant 0 : i32
    %c0_i32_0 = arith.constant 0 : i32
    %c0_i32_1 = arith.constant 0 : i32
    return %arg0, %c0_i32, %c0_i32_0 : i32, i32, i32
  }
}

</mosaic_0001>

<llo_original>
// kernel: tpu_custom_call.1
$region0: #{tpu_custom_call.1}
  #allocation0 [shape = 'u32[]', space=smem, size = 0x4, offset = 0x4, fixed_abs, tag = 'smem constant byte address 0x4 - core index']
  #allocation1 [shape = 'u32[72,128]{1,0:T(1,128)}', space=vmem, size = 0x9000, scoped, tag = 'internal scratch']
  %s0 = inlined_call_operand.hbm [shape: f32[2,16,64], index: 0, kind: input, shape index: {}]
  %s1 = inlined_call_operand.hbm [shape: f32[3,64,128], index: 1, kind: input, shape index: {}]
  %s2 = inlined_call_operand.vmem [shape: f32[1,128], index: 2, kind: input, shape index: {}]
  %s3 = inlined_call_operand.hbm [shape: f32[2,16,128], index: 3, kind: output, shape index: {}]
  %s4 = sld [smem:[#allocation0]]
  $region53: #{tpu_custom_call.1} parent=0
    _
  %s6 = ssub.s32 1, %s4
  %s7 = scalar_select 0, %s6, %s4
  $region1: #{tpu_custom_call.1} parent=0
    #allocation2 [shape = 'u8[16384]{0}', space=vmem, size = 0x4000, scoped, tag = 'input window, operand 0']
    #allocation3 [shape = 's32[2]{0}', space=sflag, size = 0x8, scoped, tag = 'scoped memory for tpu_custom_call.1']
    #allocation4 [shape = 's32[2]{0}', space=sflag, size = 0x8, scoped, tag = 'scoped memory for tpu_custom_call.1']
    #allocation5 [shape = 'u8[98304]{0}', space=vmem, size = 0x18000, scoped, tag = 'input window, operand 1, single buffered']
    #allocation6 [shape = 's32[1]{0}', space=sflag, size = 0x4, scoped, tag = 'scoped memory for tpu_custom_call.1']
    #allocation7 [shape = 'u8[16384]{0}', space=vmem, size = 0x4000, scoped, tag = 'output window, operand 0']
    %8 = vsyncpa [#allocation3], 0
    %s9 = scalar_lea.sflag [#allocation3], 1
    %10 = vsyncpa %s9, 0
    %11 = vsyncpa [#allocation6], 0
    %12 = vsyncpa [#allocation4], 0
    %s13 = scalar_lea.sflag [#allocation4], 1
    %14 = vsyncpa %s13, 0
    loop: start=0, step=1, limit=4
    $region2: #{tpu_custom_call.1} parent=1 // loop_pre_header
      _
    $region3: #{tpu_custom_call.1} parent=1 // loop_header
      %s16 = sphi 0, %s20
      %p17 = scmp.ge.s32.totalorder %s16, 4
      %s26 = sphi 0, %s28
      %s29 = sphi 0, %s26
      %s30 = sphi 0, %s29
      %s46 = sphi 0, %s30
      %s50 = sphi 0, %s50
      %s52 = sphi 0, %s50
      %s53 = sphi 0, %s52
      %s67 = sphi 0, %s53
      %s71 = sphi 0, %s71
      %s73 = sphi 0, %s71
      %s74 = sphi 0, %s73
      %s88 = sphi 0, %s74
      %s94 = sphi 0, %s96
      %s97 = sphi 0, %s94
      %s98 = sphi 0, %s97
      %s114 = sphi 0, %s98
    $region4: #{tpu_custom_call.1} parent=1 // loop_header_branch
      %19 = sbr.rel (%p17) target = $region8
    $region5: #{tpu_custom_call.1} parent=1 // loop_body
      %s21 = ssub.s32 %s16, 1
      %s22 = ssub.s32 %s16, 2
      %s23 = sadd.s32 %s16, 1
      %s24 = ssub.s32 %s16, %s23
      %p25 = scmp.eq.s32.totalorder %s24, 0
      %s27 = sadd.s32 %s26, 1
      %s28 = scalar_select %p25, %s26, %s27
      %p31 = pneg %p25
      %p32 = scmp.eq.s32.totalorder %s16, 1
      %p33 = por %p31, %p32
      %p34 = scmp.ne.s32.totalorder %s26, %s29
      %p35 = scmp.eq.s32.totalorder %s16, 0
      %p36 = por %p34, %p35
      %p37 = scmp.ne.s32.totalorder %s26, %s29
      %p38 = scmp.eq.s32.totalorder %s21, 1
      %p39 = por %p37, %p38
      %p40 = scmp.ne.s32.totalorder %s29, %s30
      %p41 = scmp.eq.s32.totalorder %s21, 0
      %p42 = por %p40, %p41
      %p43 = scmp.ne.s32.totalorder %s29, %s30
      %p44 = scmp.eq.s32.totalorder %s22, 1
      %p45 = por %p43, %p44
      %p47 = scmp.ne.s32.totalorder %s30, %s46
      %p48 = scmp.eq.s32.totalorder %s22, 0
      %p49 = por %p47, %p48
      %s51 = sadd.s32 %s50, 1
      %p54 = scmp.eq.s32.totalorder %s16, 1
      %p55 = scmp.ne.s32.totalorder %s50, %s52
      %p56 = scmp.eq.s32.totalorder %s16, 0
      %p57 = por %p55, %p56
      %p58 = scmp.ne.s32.totalorder %s50, %s52
      %p59 = scmp.eq.s32.totalorder %s21, 1
      %p60 = por %p58, %p59
      %p61 = scmp.ne.s32.totalorder %s52, %s53
      %p62 = scmp.eq.s32.totalorder %s21, 0
      %p63 = por %p61, %p62
      %p64 = scmp.ne.s32.totalorder %s52, %s53
      %p65 = scmp.eq.s32.totalorder %s22, 1
      %p66 = por %p64, %p65
      %p68 = scmp.ne.s32.totalorder %s53, %s67
      %p69 = scmp.eq.s32.totalorder %s22, 0
      %p70 = por %p68, %p69
      %s72 = sadd.s32 %s71, 1
      %p75 = scmp.eq.s32.totalorder %s16, 1
      %p76 = scmp.ne.s32.totalorder %s71, %s73
      %p77 = scmp.eq.s32.totalorder %s16, 0
      %p78 = por %p76, %p77
      %p79 = scmp.ne.s32.totalorder %s71, %s73
      %p80 = scmp.eq.s32.totalorder %s21, 1
      %p81 = por %p79, %p80
      %p82 = scmp.ne.s32.totalorder %s73, %s74
      %p83 = scmp.eq.s32.totalorder %s21, 0
      %p84 = por %p82, %p83
      %p85 = scmp.ne.s32.totalorder %s73, %s74
      %p86 = scmp.eq.s32.totalorder %s22, 1
      %p87 = por %p85, %p86
      %p89 = scmp.ne.s32.totalorder %s74, %s88
      %p90 = scmp.eq.s32.totalorder %s22, 0
      %p91 = por %p89, %p90
      %s92 = ssub.s32 %s16, %s23
      %p93 = scmp.eq.s32.totalorder %s92, 0
      %s95 = sadd.s32 %s94, 1
      %s96 = scalar_select %p93, %s94, %s95
      %p99 = pneg %p93
      %p100 = scmp.eq.s32.totalorder %s16, 1
      %p101 = por %p99, %p100
      %p102 = scmp.ne.s32.totalorder %s94, %s97
      %p103 = scmp.eq.s32.totalorder %s16, 0
      %p104 = por %p102, %p103
      %p105 = scmp.ne.s32.totalorder %s94, %s97
      %p106 = scmp.eq.s32.totalorder %s21, 1
      %p107 = por %p105, %p106
      %p108 = scmp.ne.s32.totalorder %s97, %s98
      %p109 = scmp.eq.s32.totalorder %s21, 0
      %p110 = por %p108, %p109
      %p111 = scmp.ne.s32.totalorder %s97, %s98
      %p112 = scmp.eq.s32.totalorder %s22, 1
      %p113 = por %p111, %p112
      %p115 = scmp.ne.s32.totalorder %s98, %s114
      %p116 = scmp.eq.s32.totalorder %s22, 0
      %p117 = por %p115, %p116
      %p118 = scmp.le.s32.totalorder 1, %s16
      %p119 = scmp.lt.s32.totalorder %s16, 3
      %p120 = pnand %p118, %p119
      %p121 = pneg %p120
      // Predicated region
      $region9: #{tpu_custom_call.1} parent=5 // pred_check
        _
      $region10: #{tpu_custom_call.1} parent=5 // pred_check_branch
        %123 = sbr.rel (%p120) target = $region12
      $region11: #{tpu_custom_call.1} parent=5 // pred_region
        %s124 = ssub.s32 %s16, 1
        // Predicated region
        $region13: #{tpu_custom_call.1} parent=11 // pred_check
          %p125 = pneg %p63
        $region14: #{tpu_custom_call.1} parent=11 // pred_check_branch
          %127 = sbr.rel (%p125) target = $region16
        $region15: #{tpu_custom_call.1} parent=11 // pred_region
          %129 = vsyncadd [#allocation6], 0
          %s130 = sshll.u32 %s1, 4
          %s131 = int_to_ptr.hbm [resolvable:$true] %s130
          %s132 = sshll.u32 [#allocation5], 4
          %s133 = int_to_ptr.vmem [resolvable:$true] %s132
          %138 = dma.hbm_to_vmem [thread:$0]  %s131, 3072, %s133, [#allocation6], 128, 128, 8
        $region16: #{tpu_custom_call.1} parent=11 // pred_fallthru
          _
        // Predicated region
        $region17: #{tpu_custom_call.1} parent=11 // pred_check
          %p139 = pneg %p84
        $region18: #{tpu_custom_call.1} parent=11 // pred_check_branch
          %141 = sbr.rel (%p139) target = $region20
        $region19: #{tpu_custom_call.1} parent=11 // pred_region
          _
        $region20: #{tpu_custom_call.1} parent=11 // pred_fallthru
          _
      $region12: #{tpu_custom_call.1} parent=5 // pred_fallthru
        _
      %p142 = scmp.lt.s32.totalorder %s16, 2
      // Predicated region
      $region21: #{tpu_custom_call.1} parent=5 // pred_check
        %p143 = pneg %p142
      $region22: #{tpu_custom_call.1} parent=5 // pred_check_branch
        %145 = sbr.rel (%p143) target = $region24
      $region23: #{tpu_custom_call.1} parent=5 // pred_region
        // Predicated region
        $region25: #{tpu_custom_call.1} parent=23 // pred_check
          %p146 = pneg %p36
        $region26: #{tpu_custom_call.1} parent=23 // pred_check_branch
          %148 = sbr.rel (%p146) target = $region28
        $region27: #{tpu_custom_call.1} parent=23 // pred_region
          %s149 = sand.u32 %s26, 1
          %s150 = scalar_lea.sflag [#allocation3], %s149
          %s151 = sand.u32 %s26, 1
          %s152 = smul.addr %s151, 16
          %s153 = scalar_lea.vmem [#allocation2], %s152
          %155 = vsyncadd %s150, 0
          %s156 = smul.addr %s16, 2
          %s157 = smul.addr %s156, 8
          %s158 = scalar_lea.hbm %s0, %s157
          %s159 = sshll.u32 %s158, 4
          %s160 = int_to_ptr.hbm [resolvable:$true] %s159
          %s161 = sshll.u32 %s153, 4
          %s162 = int_to_ptr.vmem [resolvable:$true] %s161
          %167 = dma.hbm_to_vmem [thread:$0]  %s160, 256, %s162, %s150, 128, 128, 8
        $region28: #{tpu_custom_call.1} parent=23 // pred_fallthru
          _
      $region24: #{tpu_custom_call.1} parent=5 // pred_fallthru
        _
      %p168 = scmp.le.s32.totalorder 1, %s16
      %p169 = scmp.lt.s32.totalorder %s16, 3
      %p170 = pnand %p168, %p169
      %p171 = pneg %p170
      // Predicated region
      $region29: #{tpu_custom_call.1} parent=5 // pred_check
        _
      $region30: #{tpu_custom_call.1} parent=5 // pred_check_branch
        %173 = sbr.rel (%p170) target = $region32
      $region31: #{tpu_custom_call.1} parent=5 // pred_region
        %s174 = ssub.s32 %s16, 1
        %s175 = sand.u32 %s29, 1
        %s176 = scalar_lea.sflag [#allocation3], %s175
        %s177 = sand.u32 %s29, 1
        %s178 = smul.addr %s177, 16
        %s179 = scalar_lea.vmem [#allocation2], %s178
        // Predicated region
        $region33: #{tpu_custom_call.1} parent=31 // pred_check
          %p180 = pneg %p42
        $region34: #{tpu_custom_call.1} parent=31 // pred_check_branch
          %182 = sbr.rel (%p180) target = $region36
        $region35: #{tpu_custom_call.1} parent=31 // pred_region
          %184 = dma.done %s176, 256
        $region36: #{tpu_custom_call.1} parent=31 // pred_fallthru
          _
        // Predicated region
        $region37: #{tpu_custom_call.1} parent=31 // pred_check
          %p185 = pneg %p63
        $region38: #{tpu_custom_call.1} parent=31 // pred_check_branch
          %187 = sbr.rel (%p185) target = $region40
        $region39: #{tpu_custom_call.1} parent=31 // pred_region
          %189 = dma.done [#allocation6], 3072
        $region40: #{tpu_custom_call.1} parent=31 // pred_fallthru
          _
        %s190 = sand.u32 %s29, 1
        %s191 = scalar_lea.sflag [#allocation3], %s190
        %s192 = sand.u32 %s29, 1
        %s193 = smul.addr %s192, 16
        %s194 = scalar_lea.vmem [#allocation2], %s193
        %p195 = pneg %p42
        %p196 = pneg %p39
        %p197 = pneg %p63
        %p198 = pneg %p60
        %p199 = pneg %p84
        %p200 = pneg %p81
        %p201 = pneg %p110
        %p202 = pneg %p107
        %s203 = sand.u32 %s97, 1
        %s204 = scalar_lea.sflag [#allocation4], %s203
        %s205 = sand.u32 %s97, 1
        %s206 = smul.addr %s205, 16
        %s207 = scalar_lea.vmem [#allocation7], %s206
        %v208 = vld [vmem:[%s179] sm:$0xff]
        %v209 = vld [vmem:[%s179 + $0x8] sm:$0xff]
        %v210 = vld [vmem:[#allocation5] sm:$0xff]
        %v211 = vld [vmem:[#allocation5 + $0x8] sm:$0xff]
        %v212 = vld [vmem:[#allocation5 + $0x10] sm:$0xff]
        %v213 = vld [vmem:[#allocation5 + $0x18] sm:$0xff]
        %v214 = vld [vmem:[#allocation5 + $0x20] sm:$0xff]
        %v215 = vld [vmem:[#allocation5 + $0x28] sm:$0xff]
        %v216 = vld [vmem:[#allocation5 + $0x30] sm:$0xff]
        %v217 = vld [vmem:[#allocation5 + $0x38] sm:$0xff]
        %vm218 = vcmask 523264
        %v220 = vsel %vm218, %v208, 0
        %v223 = vsel %vm218, %v209, 0
        %225 = vmatpush.msra.mxu0 0.0
        %226 = vmatpush.msra.mxu0 0.0
        %227 = vmatpush.msra.mxu0 0.0
        %228 = vmatpush.msra.mxu0 0.0
        %229 = vmatpush.msra.mxu0 0.0
        %230 = vmatpush.msra.mxu0 0.0
        %231 = vmatpush.msra.mxu0 0.0
        %232 = vmatpush.msra.mxu0 0.0
        %233 = vmatpush.msra.mxu0 %v217
        %234 = vmatpush.msra.mxu0 %v216
        %235 = vmatpush.msra.mxu0 %v215
        %236 = vmatpush.msra.mxu0 %v214
        %237 = vmatpush.msra.mxu0 %v213
        %238 = vmatpush.msra.mxu0 %v212
        %239 = vmatpush.msra.mxu0 %v211
        %240 = vmatpush.msra.mxu0 %v210
        %241 = vmatmul.f32.gmra.mxu0 %v220
        %v242 = vpop.f32.mrf.mxu0
        %v243 = vadd.f32 0.0, %v242
        %244 = vmatmul.f32.gmra.mxu0 %v223
        %v245 = vpop.f32.mrf.mxu0
        %v246 = vadd.f32 0.0, %v245
        %247 = vdwg.mxu0
        %vm250 = vcmask 1040384
        %v251 = vrot.slane %v243, 7
        %v252 = vrot.slane %v246, 7
        %v253 = vsel %vm250, %v251, %v252
        %v256 = vsel %vm250, 0.0, %v251
        %v257 = vadd.f32 %v256, 0.0
        %v258 = vadd.f32 %v253, 0.0
        %s259 = scalar_lea.vmem [#allocation5], 64
        %v260 = vld [vmem:[%s259] sm:$0xff]
        %v261 = vld [vmem:[%s259 + $0x8] sm:$0xff]
        %v262 = vld [vmem:[%s259 + $0x10] sm:$0xff]
        %v263 = vld [vmem:[%s259 + $0x18] sm:$0xff]
        %v264 = vld [vmem:[%s259 + $0x20] sm:$0xff]
        %v265 = vld [vmem:[%s259 + $0x28] sm:$0xff]
        %v266 = vld [vmem:[%s259 + $0x30] sm:$0xff]
        %v267 = vld [vmem:[%s259 + $0x38] sm:$0xff]
        %268 = vmatpush.msra.mxu0 0.0
        %269 = vmatpush.msra.mxu0 0.0
        %270 = vmatpush.msra.mxu0 0.0
        %271 = vmatpush.msra.mxu0 0.0
        %272 = vmatpush.msra.mxu0 0.0
        %273 = vmatpush.msra.mxu0 0.0
        %274 = vmatpush.msra.mxu0 0.0
        %275 = vmatpush.msra.mxu0 0.0
        %276 = vmatpush.msra.mxu0 %v267
        %277 = vmatpush.msra.mxu0 %v266
        %278 = vmatpush.msra.mxu0 %v265
        %279 = vmatpush.msra.mxu0 %v264
        %280 = vmatpush.msra.mxu0 %v263
        %281 = vmatpush.msra.mxu0 %v262
        %282 = vmatpush.msra.mxu0 %v261
        %283 = vmatpush.msra.mxu0 %v260
        %284 = vmatmul.f32.gmra.mxu0 %v220
        %v285 = vpop.f32.mrf.mxu0
        %v286 = vadd.f32 0.0, %v285
        %287 = vmatmul.f32.gmra.mxu0 %v223
        %v288 = vpop.f32.mrf.mxu0
        %v289 = vadd.f32 0.0, %v288
        %290 = vdwg.mxu0
        %v291 = vadd.f32 %v257, %v286
        %v292 = vadd.f32 %v258, %v289
        %s293 = scalar_lea.vmem [#allocation5], 128
        %v294 = vld [vmem:[%s293] sm:$0xff]
        %v295 = vld [vmem:[%s293 + $0x8] sm:$0xff]
        %v296 = vld [vmem:[%s293 + $0x10] sm:$0xff]
        %v297 = vld [vmem:[%s293 + $0x18] sm:$0xff]
        %v298 = vld [vmem:[%s293 + $0x20] sm:$0xff]
        %v299 = vld [vmem:[%s293 + $0x28] sm:$0xff]
        %v300 = vld [vmem:[%s293 + $0x30] sm:$0xff]
        %v301 = vld [vmem:[%s293 + $0x38] sm:$0xff]
        %vm302 = vcmask 1046528
        %v303 = vrot.slane %v208, 1
        %v304 = vrot.slane %v209, 1
        %v305 = vsel %vm302, %v303, %v304
        %v306 = vsel %vm218, %v305, 0
        %v308 = vsel %vm218, %v304, 0
        %310 = vmatpush.msra.mxu0 0.0
        %311 = vmatpush.msra.mxu0 0.0
        %312 = vmatpush.msra.mxu0 0.0
        %313 = vmatpush.msra.mxu0 0.0
        %314 = vmatpush.msra.mxu0 0.0
        %315 = vmatpush.msra.mxu0 0.0
        %316 = vmatpush.msra.mxu0 0.0
        %317 = vmatpush.msra.mxu0 0.0
        %318 = vmatpush.msra.mxu0 %v301
        %319 = vmatpush.msra.mxu0 %v300
        %320 = vmatpush.msra.mxu0 %v299
        %321 = vmatpush.msra.mxu0 %v298
        %322 = vmatpush.msra.mxu0 %v297
        %323 = vmatpush.msra.mxu0 %v296
        %324 = vmatpush.msra.mxu0 %v295
        %325 = vmatpush.msra.mxu0 %v294
        %326 = vmatmul.f32.gmra.mxu0 %v306
        %v327 = vpop.f32.mrf.mxu0
        %v328 = vadd.f32 0.0, %v327
        %329 = vmatmul.f32.gmra.mxu0 %v308
        %v330 = vpop.f32.mrf.mxu0
        %v331 = vadd.f32 0.0, %v330
        %332 = vdwg.mxu0
        %v333 = vsel %vm302, %v331, 0.0
        %v334 = vadd.f32 %v291, %v328
        %v335 = vadd.f32 %v292, %v333
        %v336 = vld [vmem:[%s2] sm:$0x1]
        %v338 = vperm.slane %v336, 0
        %v340 = vadd.f32 %v334, %v338
        %v341 = vadd.f32 %v335, %v338
        %v342 = vmax.f32 %v340, 0.0
        %v343 = vmax.f32 %v341, 0.0
        %344 = vst [vmem:[%s207] sm:$0xff] %v342
        %345 = vst [vmem:[%s207 + $0x8] sm:$0xff] %v343
        %s346 = sand.u32 %s97, 1
        %s347 = scalar_lea.sflag [#allocation4], %s346
        %s348 = sand.u32 %s97, 1
        %s349 = smul.addr %s348, 16
        %s350 = scalar_lea.vmem [#allocation7], %s349
        // Predicated region
        $region41: #{tpu_custom_call.1} parent=31 // pred_check
          %p351 = pneg %p107
        $region42: #{tpu_custom_call.1} parent=31 // pred_check_branch
          %353 = sbr.rel (%p351) target = $region44
        $region43: #{tpu_custom_call.1} parent=31 // pred_region
          %355 = vsyncadd %s347, 0
          %s356 = smul.addr %s21, 2
          %s357 = smul.addr %s356, 8
          %s358 = scalar_lea.hbm %s3, %s357
          %s359 = sshll.u32 %s350, 4
          %s360 = int_to_ptr.vmem [resolvable:$true] %s359
          %s361 = sshll.u32 %s358, 4
          %s362 = int_to_ptr.hbm [resolvable:$true] %s361
          %367 = dma.vmem_to_hbm [thread:$0]  %s360, 256, %s362, %s347, 128, 128, 8
        $region44: #{tpu_custom_call.1} parent=31 // pred_fallthru
          _
      $region32: #{tpu_custom_call.1} parent=5 // pred_fallthru
        _
      %p368 = scmp.le.s32.totalorder 2, %s16
      // Predicated region
      $region45: #{tpu_custom_call.1} parent=5 // pred_check
        %p369 = pneg %p368
      $region46: #{tpu_custom_call.1} parent=5 // pred_check_branch
        %371 = sbr.rel (%p369) target = $region48
      $region47: #{tpu_custom_call.1} parent=5 // pred_region
        %s372 = ssub.s32 %s16, 2
        // Predicated region
        $region49: #{tpu_custom_call.1} parent=47 // pred_check
          %p373 = pneg %p113
        $region50: #{tpu_custom_call.1} parent=47 // pred_check_branch
          %375 = sbr.rel (%p373) target = $region52
        $region51: #{tpu_custom_call.1} parent=47 // pred_region
          %s376 = sand.u32 %s98, 1
          %s377 = scalar_lea.sflag [#allocation4], %s376
          %s378 = sand.u32 %s98, 1
          %s379 = smul.addr %s378, 16
          %s380 = scalar_lea.vmem [#allocation7], %s379
          %382 = dma.done %s377, 256
        $region52: #{tpu_custom_call.1} parent=47 // pred_fallthru
          _
      $region48: #{tpu_custom_call.1} parent=5 // pred_fallthru
        _
    $region6: #{tpu_custom_call.1} parent=1 // loop_footer
      %s20 = sadd.s32 1, %s16
    $region7: #{tpu_custom_call.1} parent=1 // loop_footer_branch
      %15 = sbr.rel target = $region3
    $region8: #{tpu_custom_call.1} parent=1 // loop_exit
      _
    %383 = vsyncpa [#allocation3], 1
    %s384 = scalar_lea.sflag [#allocation3], 1
    %385 = vsyncpa %s384, 1
    %386 = vsyncpa [#allocation6], 1
    %387 = vsyncpa [#allocation4], 1
    %s388 = scalar_lea.sflag [#allocation4], 1
    %389 = vsyncpa %s388, 1

</llo_original>
